<compile_context>
chip_gen: v7x
topology: tpu7x:2x2x1
jax: 0.10.0
libtpu: 0.0.40
codegen_flags: <defaults>
</compile_context>

<pallas_src>
import jax
import jax.numpy as jnp
import numpy as np
from jax import lax
from jax.experimental import pallas as pl
from jax.experimental.pallas import tpu as pltpu

EPS = 1e-5        # nn.InstanceNorm2d default
NEG_SLOPE = 0.01  # nn.LeakyReLU default


def _round_up(v, m):
    return (v + m - 1) // m * m


def _vmem_limit(block_bytes):
    # ~2x for double buffering, 2x headroom, clamped to [16 MiB, 64 MiB] (safe on v5e/v6e/v7x).
    return int(min(max(4 * block_bytes + (4 << 20), 16 << 20), 64 << 20))


def _pick_tm(m_p, k_p, c_out_p, budget=12 << 20):
    """Largest lane-dense spatial tile whose double-buffered VMEM footprint fits the budget."""
    def fits(tm):
        fp_a = 2 * (k_p * tm * 2 + c_out_p * tm * 2) + 2 * c_out_p * k_p * 2   # kernel A
        fp_b = 2 * (4 * c_out_p * tm * 2 + 4 * c_out_p * tm * 4)               # kernel B
        return max(fp_a, fp_b) <= budget
    if m_p <= 2048 and fits(m_p):
        return m_p
    for tm in (2048, 1024, 512, 256, 128):
        if m_p % tm == 0 and fits(tm):
            return tm
    return 128


# ----------------------------------------------------------------------------- kernels
def conv_phase_kernel(pat_ref, w_ref, y_ref, sum_ref, ssq_ref):
    # pat_ref: (1, 1, K_pad, tm)      bf16  one phase / batch / M-tile of polyphase patches
    # w_ref:   (1, C_out_pad, K_pad)  bf16  per-phase weight matrix (resident across M-tiles)
    # y_ref:   (1, C_out_pad, tm)     bf16  pre-norm conv output tile
    # sum_ref, ssq_ref: (1, 1, 1, C_out_pad, 1) f32  per-tile partial InstanceNorm stats
    pat = pat_ref[0, 0]
    w = w_ref[0]
    y = jnp.dot(w, pat, preferred_element_type=jnp.float32)   # bf16 x bf16 -> f32 on MXU
    y_ref[0] = y.astype(y_ref.dtype)                          # bf16 inter-kernel buffer
    sum_ref[0, 0, 0] = jnp.sum(y, axis=1, keepdims=True)      # stats from the f32 accumulator
    ssq_ref[0, 0, 0] = jnp.sum(y * y, axis=1, keepdims=True)


def norm_act_kernel(y_ref, scale_ref, shift_ref, o_ref):
    # y_ref: (1, R, tm) bf16 with R = 4*C_out_pad (phase-major rows)
    # scale_ref / shift_ref: (1, R, 1) f32  per-channel InstanceNorm scale / shift
    y = y_ref[0].astype(jnp.float32)
    yn = y * scale_ref[0] + shift_ref[0]
    o_ref[0] = jnp.maximum(yn, NEG_SLOPE * yn).astype(o_ref.dtype)   # LeakyReLU (slope < 1)


# ----------------------------------------------------------------------------- wrapper
def unet_up(x, skip, weight):
    """x: (N, C_in, H, W); skip: (N, C_skip, 2H, 2W);
    weight: (C_in, C_out, 4, 4)  (PyTorch ConvTranspose2d layout).
    Returns (N, C_out + C_skip, 2H, 2W)."""
    n, c_in, h, w = x.shape
    c_out = weight.shape[1]
    m = h * w                         # spatial size of one output phase; full output = 4*m
    k = 4 * c_in

    # ---- padded sizes for TPU tiling ----------------------------------------------------
    c_out_p = _round_up(c_out, 16)    # sublane-aligned channel dim (bf16-friendly)
    k_p = _round_up(k, 16)            # bf16 sublane group
    m_p = _round_up(m, 128)           # lane-dense spatial axis
    tm = _pick_tm(m_p, k_p, c_out_p)
    mt = m_p // tm
    r = 4 * c_out_p                   # phase-major row count of the pre-norm buffer

    # ---- polyphase patches & weights (wrapper-side layout plumbing) -----------------------
    # Output pixel (2*py+ry, 2*px+rx) only sees 2x2 kernel taps; for tap (a,b) in {0,1}^2:
    #   input row  = py + ry + a - 1   (hence pad x by 1),  ky = 3 - 2*a - ry
    #   input col  = px + rx + b - 1,                        kx = 3 - 2*b - rx
    xb = x.astype(jnp.bfloat16)
    wb = weight.astype(jnp.bfloat16)
    xp = jnp.pad(xb, ((0, 0), (0, 0), (1, 1), (1, 1)))           # (N, C_in, H+2, W+2) bf16
    phase_pats, phase_w = [], []
    for ry in (0, 1):
        for rx in (0, 1):
            taps, wts = [], []
            for a in (0, 1):
                for b in (0, 1):
                    dy, dx = ry + a, rx + b
                    ky, kx = 3 - 2 * a - ry, 3 - 2 * b - rx
                    taps.append(xp[:, :, dy:dy + h, dx:dx + w])  # (N, C_in, H, W)
                    wts.append(wb[:, :, ky, kx])                 # (C_in, C_out)
            pat = jnp.stack(taps, axis=2).reshape(n, k, m)       # row = ci*4 + (a*2+b)
            wm = jnp.stack(wts, axis=1).reshape(k, c_out).T      # (C_out, K), same row order
            phase_pats.append(pat)
            phase_w.append(wm)
    pats = jnp.stack(phase_pats, axis=1)                         # (N, 4, K, M)   bf16
    wmats = jnp.stack(phase_w, axis=0)                           # (4, C_out, K)  bf16

    pats = jnp.pad(pats, ((0, 0), (0, 0), (0, k_p - k), (0, m_p - m)))
    wmats = jnp.pad(wmats, ((0, 0), (0, c_out_p - c_out), (0, k_p - k)))

    # ---- kernel A: polyphase conv + per-tile partial stats (all grid axes parallel) ------
    blk_a = k_p * tm * 2 + c_out_p * k_p * 2 + c_out_p * tm * 2 + 2 * c_out_p * 128 * 4
    y_pre, psum, pssq = pl.pallas_call(
        conv_phase_kernel,
        out_shape=(
            jax.ShapeDtypeStruct((n, r, m_p), jnp.bfloat16),
            jax.ShapeDtypeStruct((n, 4, mt, c_out_p, 1), jnp.float32),
            jax.ShapeDtypeStruct((n, 4, mt, c_out_p, 1), jnp.float32),
        ),
        grid_spec=pltpu.PrefetchScalarGridSpec(
            num_scalar_prefetch=0,
            grid=(n, 4, mt),                       # M-tiles innermost -> weights stay resident
            in_specs=[
                pl.BlockSpec((1, 1, k_p, tm), lambda i, p, j: (i, p, 0, j)),
                pl.BlockSpec((1, c_out_p, k_p), lambda i, p, j: (p, 0, 0)),
            ],
            out_specs=[
                pl.BlockSpec((1, c_out_p, tm), lambda i, p, j: (i, p, j)),
                pl.BlockSpec((1, 1, 1, c_out_p, 1), lambda i, p, j: (i, p, j, 0, 0)),
                pl.BlockSpec((1, 1, 1, c_out_p, 1), lambda i, p, j: (i, p, j, 0, 0)),
            ],
        ),
        compiler_params=pltpu.CompilerParams(
            dimension_semantics=("parallel", "parallel", "parallel"),
            vmem_limit_bytes=_vmem_limit(blk_a)),
    )(pats, wmats)

    # ---- tiny host reduction: mean / rstd per (n, channel); padded cols/channels are 0 ---
    cnt = float(4 * m)                                  # true spatial count = (2H)*(2W)
    s1 = psum[..., 0].sum(axis=(1, 2))                  # (N, C_out_p)
    s2 = pssq[..., 0].sum(axis=(1, 2))
    mean = s1 / cnt
    var = jnp.maximum(s2 / cnt - mean * mean, 0.0)      # one-pass (biased) variance
    rstd = lax.rsqrt(var + EPS)
    scale = jnp.tile(rstd, (1, 4))[:, :, None]          # (N, R, 1), phase-major rows
    shift = jnp.tile(-mean * rstd, (1, 4))[:, :, None]

    # ---- kernel B: normalize + LeakyReLU --------------------------------------------------
    blk_b = r * tm * 2 + r * tm * 4 + 2 * r * 128 * 4
    act = pl.pallas_call(
        norm_act_kernel,
        out_shape=jax.ShapeDtypeStruct((n, r, m_p), x.dtype),
        grid_spec=pltpu.PrefetchScalarGridSpec(
            num_scalar_prefetch=0,
            grid=(n, mt),
            in_specs=[
                pl.BlockSpec((1, r, tm), lambda i, j: (i, 0, j)),
                pl.BlockSpec((1, r, 1), lambda i, j: (i, 0, 0)),
                pl.BlockSpec((1, r, 1), lambda i, j: (i, 0, 0)),
            ],
            out_specs=pl.BlockSpec((1, r, tm), lambda i, j: (i, 0, j)),
        ),
        compiler_params=pltpu.CompilerParams(
            dimension_semantics=("parallel", "parallel"),
            vmem_limit_bytes=_vmem_limit(blk_b)),
    )(y_pre, scale, shift)

    # ---- phase -> spatial interleave + channel concat (layout plumbing in the wrapper) ----
    act = act.reshape(n, 4, c_out_p, m_p)[:, :, :c_out, :m]      # drop padding
    act = act.reshape(n, 2, 2, c_out, h, w)                      # (n, ry, rx, co, py, px)
    act = act.transpose(0, 3, 4, 1, 5, 2).reshape(n, c_out, 2 * h, 2 * w)
    return jnp.concatenate([act, skip.astype(act.dtype)], axis=1)


# ----------------------------------------------------------------------------- reference
def unet_up_reference(x, skip, weight):
    """Direct (scatter-add) ConvTranspose2d + InstanceNorm + LeakyReLU + cat reference (f32)."""
    n, c_in, h, w = x.shape
    c_out = weight.shape[1]
    oh, ow = 2 * h, 2 * w
    out_pad = jnp.zeros((n, c_out, oh + 2, ow + 2), jnp.float32)
    for ky in range(4):
        for kx in range(4):
            contrib = jnp.einsum('nchw,co->nohw', x, weight[:, :, ky, kx])
            out_pad = out_pad.at[:, :, ky:ky + 2 * h:2, kx:kx + 2 * w:2].add(contrib)
    y = out_pad[:, :, 1:1 + oh, 1:1 + ow]
    mean = y.mean(axis=(2, 3), keepdims=True)
    var = y.var(axis=(2, 3), keepdims=True)          # biased, like InstanceNorm2d
    y = (y - mean) / jnp.sqrt(var + EPS)
    y = jnp.where(y >= 0, y, NEG_SLOPE * y)
    return jnp.concatenate([y, skip], axis=1)


if __name__ == "__main__":
    key = jax.random.PRNGKey(0)
    k1, k2, k3 = jax.random.split(key, 3)

    N, C_IN, C_OUT, H, W = 2, 8, 8, 8, 8
    x = jax.random.normal(k1, (N, C_IN, H, W), jnp.float32)
    skip = jax.random.normal(k2, (N, C_OUT, 2 * H, 2 * W), jnp.float32)
    # ConvTranspose2d weight shape: (in_channels, out_channels, 4, 4); deterministic init.
    weight = 0.1 * jax.random.normal(k3, (C_IN, C_OUT, 4, 4), jnp.float32)

    fn = jax.jit(unet_up)
    out = jax.block_until_ready(fn(x, skip, weight))
    assert out.shape == (N, 2 * C_OUT, 2 * H, 2 * W)

    # Tolerance reflects bf16 MXU operands + bf16 inter-kernel buffer vs. the pure-f32
    # PyTorch-semantics reference.
    ref = unet_up_reference(x, skip, weight)
    np.testing.assert_allclose(np.asarray(out), np.asarray(ref), rtol=4e-2, atol=4e-2)

    print("KERNEL_OK")
</pallas_src>

<mosaic_0001>
module attributes {stable_mosaic.version = 11 : i64} {
  func.func @conv_phase_kernel(%arg0: i32, %arg1: i32, %arg2: i32, %arg3: memref<1x1x32x128xbf16, #tpu.memory_space<vmem>>, %arg4: memref<1x16x32xbf16, #tpu.memory_space<vmem>>, %arg5: memref<1x16x128xbf16, #tpu.memory_space<vmem>>, %arg6: memref<1x1x1x16x1xf32, #tpu.memory_space<vmem>>, %arg7: memref<1x1x1x16x1xf32, #tpu.memory_space<vmem>>) attributes {dimension_semantics = [#tpu.dimension_semantics<parallel>, #tpu.dimension_semantics<parallel>, #tpu.dimension_semantics<parallel>], iteration_bounds = array<i64: 2, 4, 1>, scalar_prefetch = 0 : i64, scratch_operands = 0 : i64, tpu.core_type = #tpu.core_type<tc>, window_params = [{transform_indices = @transform_0, window_bounds = array<i64: 1, 1, 32, 128>}, {transform_indices = @transform_1, window_bounds = array<i64: 1, 16, 32>}, {transform_indices = @transform_2, window_bounds = array<i64: 1, 16, 128>}, {transform_indices = @transform_3, window_bounds = array<i64: 1, 1, 1, 16, 1>}, {transform_indices = @transform_4, window_bounds = array<i64: 1, 1, 1, 16, 1>}]} {
    %c0 = arith.constant 0 : index
    %c0_0 = arith.constant 0 : index
    %c0_1 = arith.constant 0 : index
    %c0_2 = arith.constant 0 : index
    %0 = vector.load %arg3[%c0, %c0_0, %c0_1, %c0_2] : memref<1x1x32x128xbf16, #tpu.memory_space<vmem>>, vector<1x1x32x128xbf16>
    %1 = vector.shape_cast %0 : vector<1x1x32x128xbf16> to vector<32x128xbf16>
    %c0_3 = arith.constant 0 : index
    %c0_4 = arith.constant 0 : index
    %c0_5 = arith.constant 0 : index
    %2 = vector.load %arg4[%c0_3, %c0_4, %c0_5] : memref<1x16x32xbf16, #tpu.memory_space<vmem>>, vector<1x16x32xbf16>
    %3 = vector.shape_cast %2 : vector<1x16x32xbf16> to vector<16x32xbf16>
    %cst = arith.constant dense<0.000000e+00> : vector<16x128xf32>
    %4 = tpu.matmul %3, %1, %cst {dimension_numbers = #tpu.dot_dimension_numbers<[1], [0], [0], [1], [0, 0, 1, 1], [], []>} : vector<16x32xbf16>, vector<32x128xbf16>, vector<16x128xf32> -> vector<16x128xf32>
    %5 = arith.truncf %4 : vector<16x128xf32> to vector<16x128xbf16>
    %c0_6 = arith.constant 0 : index
    %c0_7 = arith.constant 0 : index
    %c0_8 = arith.constant 0 : index
    %6 = vector.load %arg5[%c0_6, %c0_7, %c0_8] : memref<1x16x128xbf16, #tpu.memory_space<vmem>>, vector<1x16x128xbf16>
    %7 = vector.shape_cast %6 : vector<1x16x128xbf16> to vector<16x128xbf16>
    %8 = vector.shape_cast %5 : vector<16x128xbf16> to vector<1x16x128xbf16>
    tpu.vector_store %arg5[%c0_6, %c0_7, %c0_8], %8 {strides = array<i32>} : memref<1x16x128xbf16, #tpu.memory_space<vmem>>, vector<1x16x128xbf16>,
    %cst_9 = arith.constant dense<0.000000e+00> : vector<16xf32>
    %9 = vector.multi_reduction <add>, %4, %cst_9 [1] : vector<16x128xf32> to vector<16xf32>
    %10 = vector.shape_cast %9 : vector<16xf32> to vector<16x1xf32>
    %c0_10 = arith.constant 0 : index
    %c0_11 = arith.constant 0 : index
    %c0_12 = arith.constant 0 : index
    %c0_13 = arith.constant 0 : index
    %c0_14 = arith.constant 0 : index
    %11 = vector.load %arg6[%c0_10, %c0_11, %c0_12, %c0_13, %c0_14] : memref<1x1x1x16x1xf32, #tpu.memory_space<vmem>>, vector<1x1x1x16x1xf32>
    %12 = vector.shape_cast %11 : vector<1x1x1x16x1xf32> to vector<16x1xf32>
    %13 = vector.shape_cast %10 : vector<16x1xf32> to vector<1x1x1x16x1xf32>
    tpu.vector_store %arg6[%c0_10, %c0_11, %c0_12, %c0_13, %c0_14], %13 {strides = array<i32>} : memref<1x1x1x16x1xf32, #tpu.memory_space<vmem>>, vector<1x1x1x16x1xf32>,
    %14 = arith.mulf %4, %4 : vector<16x128xf32>
    %cst_15 = arith.constant dense<0.000000e+00> : vector<16xf32>
    %15 = vector.multi_reduction <add>, %14, %cst_15 [1] : vector<16x128xf32> to vector<16xf32>
    %16 = vector.shape_cast %15 : vector<16xf32> to vector<16x1xf32>
    %c0_16 = arith.constant 0 : index
    %c0_17 = arith.constant 0 : index
    %c0_18 = arith.constant 0 : index
    %c0_19 = arith.constant 0 : index
    %c0_20 = arith.constant 0 : index
    %17 = vector.load %arg7[%c0_16, %c0_17, %c0_18, %c0_19, %c0_20] : memref<1x1x1x16x1xf32, #tpu.memory_space<vmem>>, vector<1x1x1x16x1xf32>
    %18 = vector.shape_cast %17 : vector<1x1x1x16x1xf32> to vector<16x1xf32>
    %19 = vector.shape_cast %16 : vector<16x1xf32> to vector<1x1x1x16x1xf32>
    tpu.vector_store %arg7[%c0_16, %c0_17, %c0_18, %c0_19, %c0_20], %19 {strides = array<i32>} : memref<1x1x1x16x1xf32, #tpu.memory_space<vmem>>, vector<1x1x1x16x1xf32>,
    return
  }
  func.func @transform_0(%arg0: i32, %arg1: i32, %arg2: i32) -> (i32, i32, i32, i32) {
    %c0_i32 = arith.constant 0 : i32
    %c0_i32_0 = arith.constant 0 : i32
    return %arg0, %arg1, %c0_i32, %arg2 : i32, i32, i32, i32
  }
  func.func @transform_1(%arg0: i32, %arg1: i32, %arg2: i32) -> (i32, i32, i32) {
    %c0_i32 = arith.constant 0 : i32
    %c0_i32_0 = arith.constant 0 : i32
    %c0_i32_1 = arith.constant 0 : i32
    return %arg1, %c0_i32, %c0_i32_0 : i32, i32, i32
  }
  func.func @transform_2(%arg0: i32, %arg1: i32, %arg2: i32) -> (i32, i32, i32) {
    %c0_i32 = arith.constant 0 : i32
    return %arg0, %arg1, %arg2 : i32, i32, i32
  }
  func.func @transform_3(%arg0: i32, %arg1: i32, %arg2: i32) -> (i32, i32, i32, i32, i32) {
    %c0_i32 = arith.constant 0 : i32
    %c0_i32_0 = arith.constant 0 : i32
    %c0_i32_1 = arith.constant 0 : i32
    return %arg0, %arg1, %arg2, %c0_i32, %c0_i32_0 : i32, i32, i32, i32, i32
  }
  func.func @transform_4(%arg0: i32, %arg1: i32, %arg2: i32) -> (i32, i32, i32, i32, i32) {
    %c0_i32 = arith.constant 0 : i32
    %c0_i32_0 = arith.constant 0 : i32
    %c0_i32_1 = arith.constant 0 : i32
    return %arg0, %arg1, %arg2, %c0_i32, %c0_i32_0 : i32, i32, i32, i32, i32
  }
}

module attributes {stable_mosaic.version = 11 : i64} {
  func.func @norm_act_kernel(%arg0: i32, %arg1: i32, %arg2: memref<1x64x128xbf16, #tpu.memory_space<vmem>>, %arg3: memref<1x64x1xf32, #tpu.memory_space<vmem>>, %arg4: memref<1x64x1xf32, #tpu.memory_space<vmem>>, %arg5: memref<1x64x128xf32, #tpu.memory_space<vmem>>) attributes {dimension_semantics = [#tpu.dimension_semantics<parallel>, #tpu.dimension_semantics<parallel>], iteration_bounds = array<i64: 2, 1>, scalar_prefetch = 0 : i64, scratch_operands = 0 : i64, tpu.core_type = #tpu.core_type<tc>, window_params = [{transform_indices = @transform_0, window_bounds = array<i64: 1, 64, 128>}, {transform_indices = @transform_1, window_bounds = array<i64: 1, 64, 1>}, {transform_indices = @transform_2, window_bounds = array<i64: 1, 64, 1>}, {transform_indices = @transform_3, window_bounds = array<i64: 1, 64, 128>}]} {
    %c0 = arith.constant 0 : index
    %c0_0 = arith.constant 0 : index
    %c0_1 = arith.constant 0 : index
    %0 = vector.load %arg2[%c0, %c0_0, %c0_1] : memref<1x64x128xbf16, #tpu.memory_space<vmem>>, vector<1x64x128xbf16>
    %1 = vector.shape_cast %0 : vector<1x64x128xbf16> to vector<64x128xbf16>
    %2 = arith.extf %1 : vector<64x128xbf16> to vector<64x128xf32>
    %c0_2 = arith.constant 0 : index
    %c0_3 = arith.constant 0 : index
    %c0_4 = arith.constant 0 : index
    %3 = vector.load %arg3[%c0_2, %c0_3, %c0_4] : memref<1x64x1xf32, #tpu.memory_space<vmem>>, vector<1x64x1xf32>
    %4 = vector.shape_cast %3 : vector<1x64x1xf32> to vector<64x1xf32>
    %5 = vector.broadcast %4 : vector<64x1xf32> to vector<64x128xf32>
    %6 = arith.mulf %2, %5 : vector<64x128xf32>
    %c0_5 = arith.constant 0 : index
    %c0_6 = arith.constant 0 : index
    %c0_7 = arith.constant 0 : index
    %7 = vector.load %arg4[%c0_5, %c0_6, %c0_7] : memref<1x64x1xf32, #tpu.memory_space<vmem>>, vector<1x64x1xf32>
    %8 = vector.shape_cast %7 : vector<1x64x1xf32> to vector<64x1xf32>
    %9 = vector.broadcast %8 : vector<64x1xf32> to vector<64x128xf32>
    %10 = arith.addf %6, %9 : vector<64x128xf32>
    %cst = arith.constant 0.00999999977 : f32
    %11 = vector.broadcast %cst : f32 to vector<64x128xf32>
    %12 = arith.mulf %11, %10 : vector<64x128xf32>
    %13 = arith.maximumf %10, %12 : vector<64x128xf32>
    %c0_8 = arith.constant 0 : index
    %c0_9 = arith.constant 0 : index
    %c0_10 = arith.constant 0 : index
    %14 = vector.load %arg5[%c0_8, %c0_9, %c0_10] : memref<1x64x128xf32, #tpu.memory_space<vmem>>, vector<1x64x128xf32>
    %15 = vector.shape_cast %14 : vector<1x64x128xf32> to vector<64x128xf32>
    %16 = vector.shape_cast %13 : vector<64x128xf32> to vector<1x64x128xf32>
    tpu.vector_store %arg5[%c0_8, %c0_9, %c0_10], %16 {strides = array<i32>} : memref<1x64x128xf32, #tpu.memory_space<vmem>>, vector<1x64x128xf32>,
    return
  }
  func.func @transform_0(%arg0: i32, %arg1: i32) -> (i32, i32, i32) {
    %c0_i32 = arith.constant 0 : i32
    %c0_i32_0 = arith.constant 0 : i32
    return %arg0, %c0_i32, %arg1 : i32, i32, i32
  }
  func.func @transform_1(%arg0: i32, %arg1: i32) -> (i32, i32, i32) {
    %c0_i32 = arith.constant 0 : i32
    %c0_i32_0 = arith.constant 0 : i32
    %c0_i32_1 = arith.constant 0 : i32
    return %arg0, %c0_i32, %c0_i32_0 : i32, i32, i32
  }
  func.func @transform_2(%arg0: i32, %arg1: i32) -> (i32, i32, i32) {
    %c0_i32 = arith.constant 0 : i32
    %c0_i32_0 = arith.constant 0 : i32
    %c0_i32_1 = arith.constant 0 : i32
    return %arg0, %c0_i32, %c0_i32_0 : i32, i32, i32
  }
  func.func @transform_3(%arg0: i32, %arg1: i32) -> (i32, i32, i32) {
    %c0_i32 = arith.constant 0 : i32
    %c0_i32_0 = arith.constant 0 : i32
    return %arg0, %c0_i32, %arg1 : i32, i32, i32
  }
}

</mosaic_0001>

<llo_original>
// kernel: unet_up.3
$region0: #{unet_up.3}
  #allocation0 [shape = 'u32[]', space=smem, size = 0x4, offset = 0x4, fixed_abs, tag = 'smem constant byte address 0x4 - core index']
  #allocation1 [shape = 'u32[144,128]{1,0:T(1,128)}', space=vmem, size = 0x12000, scoped, tag = 'internal scratch']
  %s0 = inlined_call_operand.vmem [shape: bf16[2,64,128], index: 0, kind: input, shape index: {}]
  %s1 = inlined_call_operand.vmem [shape: f32[2,64,1], index: 1, kind: input, shape index: {}]
  %s2 = inlined_call_operand.vmem [shape: f32[2,64,1], index: 2, kind: input, shape index: {}]
  %s3 = inlined_call_operand.vmem [shape: f32[2,64,128], index: 3, kind: output, shape index: {}]
  %s4 = sld [smem:[#allocation0]]
  $region45: #{unet_up.3} parent=0
    _
  %s6 = ssub.s32 1, %s4
  %s7 = scalar_select 0, %s6, %s4
  loop: start=0, step=1, limit=4
  $region2: #{unet_up.3} parent=0 // loop_pre_header
    _
  $region3: #{unet_up.3} parent=0 // loop_header
    %s9 = sphi 0, %s13
    %p10 = scmp.ge.s32.totalorder %s9, 4
    %s16 = sphi 0, %s28
    %s17 = sphi 0, %s24
    %s18 = sphi 0, %s16
    %s19 = sphi 0, %s17
    %s20 = sphi 0, %s18
    %s21 = sphi 0, %s19
    %s33 = sphi 0, %s35
    %s36 = sphi 0, %s33
    %s37 = sphi 0, %s36
    %s53 = sphi 0, %s37
    %s59 = sphi 0, %s61
    %s62 = sphi 0, %s59
    %s63 = sphi 0, %s62
    %s79 = sphi 0, %s63
    %s85 = sphi 0, %s87
    %s88 = sphi 0, %s85
    %s89 = sphi 0, %s88
    %s105 = sphi 0, %s89
    %s113 = sphi 0, %s115
    %s116 = sphi 0, %s113
    %s117 = sphi 0, %s116
    %s133 = sphi 0, %s117
  $region4: #{unet_up.3} parent=0 // loop_header_branch
    %12 = sbr.rel (%p10) target = $region8
  $region5: #{unet_up.3} parent=0 // loop_body
    %s14 = ssub.s32 %s9, 1
    %s15 = ssub.s32 %s9, 2
    %s22 = sadd.s32 1, %s17
    %p23 = scmp.ge.s32.totalorder %s22, 1
    %s24 = scalar_select %p23, 0, %s22
    %s25 = sadd.s32 1, %s16
    %s26 = scalar_select %p23, %s25, %s16
    %p27 = scmp.ge.s32.totalorder %s26, 2
    %s28 = scalar_select %p27, 0, %s26
    %s29 = ssub.s32 %s16, %s28
    %s30 = ssub.s32 %s17, %s24
    %s31 = sor.u32 %s29, %s30
    %p32 = scmp.eq.s32.totalorder %s31, 0
    %s34 = sadd.s32 %s33, 1
    %s35 = scalar_select %p32, %s33, %s34
    %p38 = pneg %p32
    %p39 = scmp.eq.s32.totalorder %s9, 1
    %p40 = por %p38, %p39
    %p41 = scmp.ne.s32.totalorder %s33, %s36
    %p42 = scmp.eq.s32.totalorder %s9, 0
    %p43 = por %p41, %p42
    %p44 = scmp.ne.s32.totalorder %s33, %s36
    %p45 = scmp.eq.s32.totalorder %s14, 1
    %p46 = por %p44, %p45
    %p47 = scmp.ne.s32.totalorder %s36, %s37
    %p48 = scmp.eq.s32.totalorder %s14, 0
    %p49 = por %p47, %p48
    %p50 = scmp.ne.s32.totalorder %s36, %s37
    %p51 = scmp.eq.s32.totalorder %s15, 1
    %p52 = por %p50, %p51
    %p54 = scmp.ne.s32.totalorder %s37, %s53
    %p55 = scmp.eq.s32.totalorder %s15, 0
    %p56 = por %p54, %p55
    %s57 = ssub.s32 %s16, %s28
    %p58 = scmp.eq.s32.totalorder %s57, 0
    %s60 = sadd.s32 %s59, 1
    %s61 = scalar_select %p58, %s59, %s60
    %p64 = pneg %p58
    %p65 = scmp.eq.s32.totalorder %s9, 1
    %p66 = por %p64, %p65
    %p67 = scmp.ne.s32.totalorder %s59, %s62
    %p68 = scmp.eq.s32.totalorder %s9, 0
    %p69 = por %p67, %p68
    %p70 = scmp.ne.s32.totalorder %s59, %s62
    %p71 = scmp.eq.s32.totalorder %s14, 1
    %p72 = por %p70, %p71
    %p73 = scmp.ne.s32.totalorder %s62, %s63
    %p74 = scmp.eq.s32.totalorder %s14, 0
    %p75 = por %p73, %p74
    %p76 = scmp.ne.s32.totalorder %s62, %s63
    %p77 = scmp.eq.s32.totalorder %s15, 1
    %p78 = por %p76, %p77
    %p80 = scmp.ne.s32.totalorder %s63, %s79
    %p81 = scmp.eq.s32.totalorder %s15, 0
    %p82 = por %p80, %p81
    %s83 = ssub.s32 %s16, %s28
    %p84 = scmp.eq.s32.totalorder %s83, 0
    %s86 = sadd.s32 %s85, 1
    %s87 = scalar_select %p84, %s85, %s86
    %p90 = pneg %p84
    %p91 = scmp.eq.s32.totalorder %s9, 1
    %p92 = por %p90, %p91
    %p93 = scmp.ne.s32.totalorder %s85, %s88
    %p94 = scmp.eq.s32.totalorder %s9, 0
    %p95 = por %p93, %p94
    %p96 = scmp.ne.s32.totalorder %s85, %s88
    %p97 = scmp.eq.s32.totalorder %s14, 1
    %p98 = por %p96, %p97
    %p99 = scmp.ne.s32.totalorder %s88, %s89
    %p100 = scmp.eq.s32.totalorder %s14, 0
    %p101 = por %p99, %p100
    %p102 = scmp.ne.s32.totalorder %s88, %s89
    %p103 = scmp.eq.s32.totalorder %s15, 1
    %p104 = por %p102, %p103
    %p106 = scmp.ne.s32.totalorder %s89, %s105
    %p107 = scmp.eq.s32.totalorder %s15, 0
    %p108 = por %p106, %p107
    %s109 = ssub.s32 %s16, %s28
    %s110 = ssub.s32 %s17, %s24
    %s111 = sor.u32 %s109, %s110
    %p112 = scmp.eq.s32.totalorder %s111, 0
    %s114 = sadd.s32 %s113, 1
    %s115 = scalar_select %p112, %s113, %s114
    %p118 = pneg %p112
    %p119 = scmp.eq.s32.totalorder %s9, 1
    %p120 = por %p118, %p119
    %p121 = scmp.ne.s32.totalorder %s113, %s116
    %p122 = scmp.eq.s32.totalorder %s9, 0
    %p123 = por %p121, %p122
    %p124 = scmp.ne.s32.totalorder %s113, %s116
    %p125 = scmp.eq.s32.totalorder %s14, 1
    %p126 = por %p124, %p125
    %p127 = scmp.ne.s32.totalorder %s116, %s117
    %p128 = scmp.eq.s32.totalorder %s14, 0
    %p129 = por %p127, %p128
    %p130 = scmp.ne.s32.totalorder %s116, %s117
    %p131 = scmp.eq.s32.totalorder %s15, 1
    %p132 = por %p130, %p131
    %p134 = scmp.ne.s32.totalorder %s117, %s133
    %p135 = scmp.eq.s32.totalorder %s15, 0
    %p136 = por %p134, %p135
    %p137 = scmp.le.s32.totalorder 1, %s9
    %p138 = scmp.lt.s32.totalorder %s9, 3
    %p139 = pnand %p137, %p138
    %p140 = pneg %p139
    // Predicated region
    $region9: #{unet_up.3} parent=5 // pred_check
      _
    $region10: #{unet_up.3} parent=5 // pred_check_branch
      %142 = sbr.rel (%p139) target = $region12
    $region11: #{unet_up.3} parent=5 // pred_region
      %s143 = ssub.s32 %s9, 1
    $region12: #{unet_up.3} parent=5 // pred_fallthru
      _
    %p144 = scmp.lt.s32.totalorder %s9, 2
    // Predicated region
    $region13: #{unet_up.3} parent=5 // pred_check
      %p145 = pneg %p144
    $region14: #{unet_up.3} parent=5 // pred_check_branch
      %147 = sbr.rel (%p145) target = $region16
    $region15: #{unet_up.3} parent=5 // pred_region
      // Predicated region
      $region17: #{unet_up.3} parent=15 // pred_check
        %p148 = pneg %p43
      $region18: #{unet_up.3} parent=15 // pred_check_branch
        %150 = sbr.rel (%p148) target = $region20
      $region19: #{unet_up.3} parent=15 // pred_region
        %p151 = scmp.lt.s32.totalorder %s16, 1
        %s152 = scalar_select %p151, %s16, 1
        %p153 = scmp.lt.s32.totalorder %s17, 0
        %s154 = scalar_select %p153, %s17, 0
        %s155 = smul.addr %s152, 8
        %s156 = sadd.s32 %s154, %s155
        %s157 = smul.addr %s156, 4
        %s158 = scalar_lea.vmem %s0, %s157
      $region20: #{unet_up.3} parent=15 // pred_fallthru
        _
      // Predicated region
      $region21: #{unet_up.3} parent=15 // pred_check
        %p159 = pneg %p69
      $region22: #{unet_up.3} parent=15 // pred_check_branch
        %161 = sbr.rel (%p159) target = $region24
      $region23: #{unet_up.3} parent=15 // pred_region
        %p162 = scmp.lt.s32.totalorder %s16, 1
        %s163 = scalar_select %p162, %s16, 1
        %s164 = smul.addr %s163, 8
        %s165 = smul.addr %s164, 8
        %s166 = scalar_lea.vmem %s1, %s165
      $region24: #{unet_up.3} parent=15 // pred_fallthru
        _
      // Predicated region
      $region25: #{unet_up.3} parent=15 // pred_check
        %p167 = pneg %p95
      $region26: #{unet_up.3} parent=15 // pred_check_branch
        %169 = sbr.rel (%p167) target = $region28
      $region27: #{unet_up.3} parent=15 // pred_region
        %p170 = scmp.lt.s32.totalorder %s16, 1
        %s171 = scalar_select %p170, %s16, 1
        %s172 = smul.addr %s171, 8
        %s173 = smul.addr %s172, 8
        %s174 = scalar_lea.vmem %s2, %s173
      $region28: #{unet_up.3} parent=15 // pred_fallthru
        _
    $region16: #{unet_up.3} parent=5 // pred_fallthru
      _
    %p175 = scmp.le.s32.totalorder 1, %s9
    %p176 = scmp.lt.s32.totalorder %s9, 3
    %p177 = pnand %p175, %p176
    %p178 = pneg %p177
    // Predicated region
    $region29: #{unet_up.3} parent=5 // pred_check
      _
    $region30: #{unet_up.3} parent=5 // pred_check_branch
      %180 = sbr.rel (%p177) target = $region32
    $region31: #{unet_up.3} parent=5 // pred_region
      %s181 = ssub.s32 %s9, 1
      %p182 = scmp.lt.s32.totalorder %s18, 1
      %s183 = scalar_select %p182, %s18, 1
      %p184 = scmp.lt.s32.totalorder %s19, 0
      %s185 = scalar_select %p184, %s19, 0
      %s186 = smul.addr %s183, 8
      %s187 = sadd.s32 %s185, %s186
      %s188 = smul.addr %s187, 4
      %s189 = scalar_lea.vmem %s0, %s188
      %p190 = pneg %p49
      %p191 = pneg %p46
      %p192 = scmp.lt.s32.totalorder %s18, 1
      %s193 = scalar_select %p192, %s18, 1
      %s194 = smul.addr %s193, 8
      %s195 = smul.addr %s194, 8
      %s196 = scalar_lea.vmem %s1, %s195
      %p197 = pneg %p75
      %p198 = pneg %p72
      %p199 = scmp.lt.s32.totalorder %s18, 1
      %s200 = scalar_select %p199, %s18, 1
      %s201 = smul.addr %s200, 8
      %s202 = smul.addr %s201, 8
      %s203 = scalar_lea.vmem %s2, %s202
      %p204 = pneg %p101
      %p205 = pneg %p98
      %p206 = pneg %p129
      %p207 = pneg %p126
      %p208 = scmp.lt.s32.totalorder %s18, 1
      %s209 = scalar_select %p208, %s18, 1
      %p210 = scmp.lt.s32.totalorder %s19, 0
      %s211 = scalar_select %p210, %s19, 0
      %s212 = smul.addr %s209, 8
      %s213 = sadd.s32 %s211, %s212
      %s214 = smul.addr %s213, 8
      %s215 = scalar_lea.vmem %s3, %s214
      %p216 = scmp.lt.s32.totalorder %s18, 1
      %s217 = scalar_select %p216, %s18, 1
      %p218 = scmp.lt.s32.totalorder %s19, 0
      %s219 = scalar_select %p218, %s19, 0
      %s220 = smul.addr %s217, 8
      %s221 = sadd.s32 %s219, %s220
      %s222 = smul.addr %s221, 4
      %s223 = scalar_lea.vmem %s0, %s222
      %p224 = scmp.lt.s32.totalorder %s18, 1
      %s225 = scalar_select %p224, %s18, 1
      %s226 = smul.addr %s225, 8
      %s227 = smul.addr %s226, 8
      %s228 = scalar_lea.vmem %s1, %s227
      %p229 = scmp.lt.s32.totalorder %s18, 1
      %s230 = scalar_select %p229, %s18, 1
      %s231 = smul.addr %s230, 8
      %s232 = smul.addr %s231, 8
      %s233 = scalar_lea.vmem %s2, %s232
      %p234 = scmp.lt.s32.totalorder %s18, 1
      %s235 = scalar_select %p234, %s18, 1
      %p236 = scmp.lt.s32.totalorder %s19, 0
      %s237 = scalar_select %p236, %s19, 0
      %s238 = smul.addr %s235, 8
      %s239 = sadd.s32 %s237, %s238
      %s240 = smul.addr %s239, 8
      %s241 = scalar_lea.vmem %s3, %s240
      %v242 = vld [vmem:[%s223] sm:$0xf]
      %v243 = vld [vmem:[%s223 + $0x4] sm:$0xf]
      %v244 = vld [vmem:[%s223 + $0x8] sm:$0xf]
      %v245 = vld [vmem:[%s223 + $0xc] sm:$0xf]
      %v246 = vld [vmem:[%s223 + $0x10] sm:$0xf]
      %v247 = vld [vmem:[%s223 + $0x14] sm:$0xf]
      %v248 = vld [vmem:[%s223 + $0x18] sm:$0xf]
      %v249 = vld [vmem:[%s223 + $0x1c] sm:$0xf]
      %v250 = vunpack.c.l.bf16 %v242
      %v251 = vunpack.c.l.bf16 %v243
      %v252 = vunpack.c.l.bf16 %v244
      %v253 = vunpack.c.l.bf16 %v245
      %v254 = vunpack.c.l.bf16 %v246
      %v255 = vunpack.c.l.bf16 %v247
      %v256 = vunpack.c.l.bf16 %v248
      %v257 = vunpack.c.l.bf16 %v249
      %v258 = vld [vmem:[%s228] sm:$0xff]
      %v259 = vld [vmem:[%s228 + $0x8] sm:$0xff]
      %v260 = vld [vmem:[%s228 + $0x10] sm:$0xff]
      %v261 = vld [vmem:[%s228 + $0x18] sm:$0xff]
      %v262 = vld [vmem:[%s228 + $0x20] sm:$0xff]
      %v263 = vld [vmem:[%s228 + $0x28] sm:$0xff]
      %v264 = vld [vmem:[%s228 + $0x30] sm:$0xff]
      %v265 = vld [vmem:[%s228 + $0x38] sm:$0xff]
      %267 = vset.pattern.permute.xlu0 0
      %268 = vperm.xlu0 %267, %v258
      %v269 = vpop.permute.xlu0 %268
      %272 = vset.pattern.permute.xlu0 0
      %273 = vperm.xlu0 %272, %v259
      %v274 = vpop.permute.xlu0 %273
      %277 = vset.pattern.permute.xlu0 0
      %278 = vperm.xlu0 %277, %v260
      %v279 = vpop.permute.xlu0 %278
      %282 = vset.pattern.permute.xlu0 0
      %283 = vperm.xlu0 %282, %v261
      %v284 = vpop.permute.xlu0 %283
      %287 = vset.pattern.permute.xlu0 0
      %288 = vperm.xlu0 %287, %v262
      %v289 = vpop.permute.xlu0 %288
      %292 = vset.pattern.permute.xlu0 0
      %293 = vperm.xlu0 %292, %v263
      %v294 = vpop.permute.xlu0 %293
      %297 = vset.pattern.permute.xlu0 0
      %298 = vperm.xlu0 %297, %v264
      %v299 = vpop.permute.xlu0 %298
      %302 = vset.pattern.permute.xlu0 0
      %303 = vperm.xlu0 %302, %v265
      %v304 = vpop.permute.xlu0 %303
      %v306 = vmul.f32 %v250, %v269
      %v307 = vmul.f32 %v251, %v274
      %v308 = vmul.f32 %v252, %v279
      %v309 = vmul.f32 %v253, %v284
      %v310 = vmul.f32 %v254, %v289
      %v311 = vmul.f32 %v255, %v294
      %v312 = vmul.f32 %v256, %v299
      %v313 = vmul.f32 %v257, %v304
      %v314 = vld [vmem:[%s233] sm:$0xff]
      %v315 = vld [vmem:[%s233 + $0x8] sm:$0xff]
      %v316 = vld [vmem:[%s233 + $0x10] sm:$0xff]
      %v317 = vld [vmem:[%s233 + $0x18] sm:$0xff]
      %v318 = vld [vmem:[%s233 + $0x20] sm:$0xff]
      %v319 = vld [vmem:[%s233 + $0x28] sm:$0xff]
      %v320 = vld [vmem:[%s233 + $0x30] sm:$0xff]
      %v321 = vld [vmem:[%s233 + $0x38] sm:$0xff]
      %323 = vset.pattern.permute.xlu0 0
      %324 = vperm.xlu0 %323, %v314
      %v325 = vpop.permute.xlu0 %324
      %328 = vset.pattern.permute.xlu0 0
      %329 = vperm.xlu0 %328, %v315
      %v330 = vpop.permute.xlu0 %329
      %333 = vset.pattern.permute.xlu0 0
      %334 = vperm.xlu0 %333, %v316
      %v335 = vpop.permute.xlu0 %334
      %338 = vset.pattern.permute.xlu0 0
      %339 = vperm.xlu0 %338, %v317
      %v340 = vpop.permute.xlu0 %339
      %343 = vset.pattern.permute.xlu0 0
      %344 = vperm.xlu0 %343, %v318
      %v345 = vpop.permute.xlu0 %344
      %348 = vset.pattern.permute.xlu0 0
      %349 = vperm.xlu0 %348, %v319
      %v350 = vpop.permute.xlu0 %349
      %353 = vset.pattern.permute.xlu0 0
      %354 = vperm.xlu0 %353, %v320
      %v355 = vpop.permute.xlu0 %354
      %358 = vset.pattern.permute.xlu0 0
      %359 = vperm.xlu0 %358, %v321
      %v360 = vpop.permute.xlu0 %359
      %v362 = vadd.f32 %v306, %v325
      %v363 = vadd.f32 %v307, %v330
      %v364 = vadd.f32 %v308, %v335
      %v365 = vadd.f32 %v309, %v340
      %v366 = vadd.f32 %v310, %v345
      %v367 = vadd.f32 %v311, %v350
      %v368 = vadd.f32 %v312, %v355
      %v369 = vadd.f32 %v313, %v360
      %v370 = vmul.f32 %v362, 0.01
      %v371 = vmul.f32 %v363, 0.01
      %v372 = vmul.f32 %v364, 0.01
      %v373 = vmul.f32 %v365, 0.01
      %v374 = vmul.f32 %v366, 0.01
      %v375 = vmul.f32 %v367, 0.01
      %v376 = vmul.f32 %v368, 0.01
      %v377 = vmul.f32 %v369, 0.01
      %v378 = vmax.f32 %v362, %v370
      %v379 = vmax.f32 %v363, %v371
      %v380 = vmax.f32 %v364, %v372
      %v381 = vmax.f32 %v365, %v373
      %v382 = vmax.f32 %v366, %v374
      %v383 = vmax.f32 %v367, %v375
      %v384 = vmax.f32 %v368, %v376
      %v385 = vmax.f32 %v369, %v377
      %386 = vst [vmem:[%s241] sm:$0xff] %v378
      %387 = vst [vmem:[%s241 + $0x8] sm:$0xff] %v379
      %388 = vst [vmem:[%s241 + $0x10] sm:$0xff] %v380
      %389 = vst [vmem:[%s241 + $0x18] sm:$0xff] %v381
      %390 = vst [vmem:[%s241 + $0x20] sm:$0xff] %v382
      %391 = vst [vmem:[%s241 + $0x28] sm:$0xff] %v383
      %392 = vst [vmem:[%s241 + $0x30] sm:$0xff] %v384
      %393 = vst [vmem:[%s241 + $0x38] sm:$0xff] %v385
      %p394 = scmp.lt.s32.totalorder %s18, 1
      %s395 = scalar_select %p394, %s18, 1
      %p396 = scmp.lt.s32.totalorder %s19, 0
      %s397 = scalar_select %p396, %s19, 0
      %s398 = smul.addr %s395, 8
      %s399 = sadd.s32 %s397, %s398
      %s400 = smul.addr %s399, 8
      %s401 = scalar_lea.vmem %s3, %s400
      // Predicated region
      $region33: #{unet_up.3} parent=31 // pred_check
        %p402 = pneg %p126
      $region34: #{unet_up.3} parent=31 // pred_check_branch
        %404 = sbr.rel (%p402) target = $region36
      $region35: #{unet_up.3} parent=31 // pred_region
        _
      $region36: #{unet_up.3} parent=31 // pred_fallthru
        _
    $region32: #{unet_up.3} parent=5 // pred_fallthru
      _
    %p405 = scmp.le.s32.totalorder 2, %s9
    // Predicated region
    $region37: #{unet_up.3} parent=5 // pred_check
      %p406 = pneg %p405
    $region38: #{unet_up.3} parent=5 // pred_check_branch
      %408 = sbr.rel (%p406) target = $region40
    $region39: #{unet_up.3} parent=5 // pred_region
      %s409 = ssub.s32 %s9, 2
      // Predicated region
      $region41: #{unet_up.3} parent=39 // pred_check
        %p410 = pneg %p132
      $region42: #{unet_up.3} parent=39 // pred_check_branch
        %412 = sbr.rel (%p410) target = $region44
      $region43: #{unet_up.3} parent=39 // pred_region
        %p413 = scmp.lt.s32.totalorder %s20, 1
        %s414 = scalar_select %p413, %s20, 1
        %p415 = scmp.lt.s32.totalorder %s21, 0
        %s416 = scalar_select %p415, %s21, 0
        %s417 = smul.addr %s414, 8
        %s418 = sadd.s32 %s416, %s417
        %s419 = smul.addr %s418, 8
        %s420 = scalar_lea.vmem %s3, %s419
      $region44: #{unet_up.3} parent=39 // pred_fallthru
        _
    $region40: #{unet_up.3} parent=5 // pred_fallthru
      _
  $region6: #{unet_up.3} parent=0 // loop_footer
    %s13 = sadd.s32 1, %s9
  $region7: #{unet_up.3} parent=0 // loop_footer_branch
    %8 = sbr.rel target = $region3
  $region8: #{unet_up.3} parent=0 // loop_exit
    _

// kernel: unet_up.2
$region0: #{unet_up.2}
  #allocation0 [shape = 'u32[]', space=smem, size = 0x4, offset = 0x4, fixed_abs, tag = 'smem constant byte address 0x4 - core index']
  #allocation1 [shape = 'u32[144,128]{1,0:T(1,128)}', space=vmem, size = 0x12000, scoped, tag = 'internal scratch']
  %s0 = inlined_call_operand.vmem [shape: bf16[2,4,32,128], index: 0, kind: input, shape index: {}]
  %s1 = inlined_call_operand.vmem [shape: bf16[4,16,32], index: 1, kind: input, shape index: {}]
  %s2 = inlined_call_operand.vmem [shape: bf16[2,64,128], index: 2, kind: output, shape index: {0}]
  %s3 = inlined_call_operand.vmem [shape: f32[2,4,1,16,1], index: 3, kind: output, shape index: {1}]
  %s4 = inlined_call_operand.vmem [shape: f32[2,4,1,16,1], index: 4, kind: output, shape index: {2}]
  %5 = xla_tuple %s2, %s3, %s4
  %s6 = sld [smem:[#allocation0]]
  $region57: #{unet_up.2} parent=0
    _
  %s8 = ssub.s32 1, %s6
  %s9 = scalar_select 0, %s8, %s6
  loop: start=0, step=1, limit=10
  $region2: #{unet_up.2} parent=0 // loop_pre_header
    _
  $region3: #{unet_up.2} parent=0 // loop_header
    %s11 = sphi 0, %s15
    %p12 = scmp.ge.s32.totalorder %s11, 10
    %s18 = sphi 0, %s37
    %s19 = sphi 0, %s33
    %s20 = sphi 0, %s29
    %s21 = sphi 0, %s18
    %s22 = sphi 0, %s19
    %s23 = sphi 0, %s20
    %s24 = sphi 0, %s21
    %s25 = sphi 0, %s22
    %s26 = sphi 0, %s23
    %s44 = sphi 0, %s46
    %s47 = sphi 0, %s44
    %s48 = sphi 0, %s47
    %s64 = sphi 0, %s48
    %s70 = sphi 0, %s72
    %s73 = sphi 0, %s70
    %s74 = sphi 0, %s73
    %s90 = sphi 0, %s74
    %s100 = sphi 0, %s102
    %s103 = sphi 0, %s100
    %s104 = sphi 0, %s103
    %s120 = sphi 0, %s104
    %s130 = sphi 0, %s132
    %s133 = sphi 0, %s130
    %s134 = sphi 0, %s133
    %s150 = sphi 0, %s134
    %s160 = sphi 0, %s162
    %s163 = sphi 0, %s160
    %s164 = sphi 0, %s163
    %s180 = sphi 0, %s164
  $region4: #{unet_up.2} parent=0 // loop_header_branch
    %14 = sbr.rel (%p12) target = $region8
  $region5: #{unet_up.2} parent=0 // loop_body
    %s16 = ssub.s32 %s11, 1
    %s17 = ssub.s32 %s11, 2
    %s27 = sadd.s32 1, %s20
    %p28 = scmp.ge.s32.totalorder %s27, 1
    %s29 = scalar_select %p28, 0, %s27
    %s30 = sadd.s32 1, %s19
    %s31 = scalar_select %p28, %s30, %s19
    %p32 = scmp.ge.s32.totalorder %s31, 4
    %s33 = scalar_select %p32, 0, %s31
    %s34 = sadd.s32 1, %s18
    %s35 = scalar_select %p32, %s34, %s18
    %p36 = scmp.ge.s32.totalorder %s35, 2
    %s37 = scalar_select %p36, 0, %s35
    %s38 = ssub.s32 %s18, %s37
    %s39 = ssub.s32 %s19, %s33
    %s40 = sor.u32 %s38, %s39
    %s41 = ssub.s32 %s20, %s29
    %s42 = sor.u32 %s40, %s41
    %p43 = scmp.eq.s32.totalorder %s42, 0
    %s45 = sadd.s32 %s44, 1
    %s46 = scalar_select %p43, %s44, %s45
    %p49 = pneg %p43
    %p50 = scmp.eq.s32.totalorder %s11, 7
    %p51 = por %p49, %p50
    %p52 = scmp.ne.s32.totalorder %s44, %s47
    %p53 = scmp.eq.s32.totalorder %s11, 0
    %p54 = por %p52, %p53
    %p55 = scmp.ne.s32.totalorder %s44, %s47
    %p56 = scmp.eq.s32.totalorder %s16, 7
    %p57 = por %p55, %p56
    %p58 = scmp.ne.s32.totalorder %s47, %s48
    %p59 = scmp.eq.s32.totalorder %s16, 0
    %p60 = por %p58, %p59
    %p61 = scmp.ne.s32.totalorder %s47, %s48
    %p62 = scmp.eq.s32.totalorder %s17, 7
    %p63 = por %p61, %p62
    %p65 = scmp.ne.s32.totalorder %s48, %s64
    %p66 = scmp.eq.s32.totalorder %s17, 0
    %p67 = por %p65, %p66
    %s68 = ssub.s32 %s19, %s33
    %p69 = scmp.eq.s32.totalorder %s68, 0
    %s71 = sadd.s32 %s70, 1
    %s72 = scalar_select %p69, %s70, %s71
    %p75 = pneg %p69
    %p76 = scmp.eq.s32.totalorder %s11, 7
    %p77 = por %p75, %p76
    %p78 = scmp.ne.s32.totalorder %s70, %s73
    %p79 = scmp.eq.s32.totalorder %s11, 0
    %p80 = por %p78, %p79
    %p81 = scmp.ne.s32.totalorder %s70, %s73
    %p82 = scmp.eq.s32.totalorder %s16, 7
    %p83 = por %p81, %p82
    %p84 = scmp.ne.s32.totalorder %s73, %s74
    %p85 = scmp.eq.s32.totalorder %s16, 0
    %p86 = por %p84, %p85
    %p87 = scmp.ne.s32.totalorder %s73, %s74
    %p88 = scmp.eq.s32.totalorder %s17, 7
    %p89 = por %p87, %p88
    %p91 = scmp.ne.s32.totalorder %s74, %s90
    %p92 = scmp.eq.s32.totalorder %s17, 0
    %p93 = por %p91, %p92
    %s94 = ssub.s32 %s18, %s37
    %s95 = ssub.s32 %s19, %s33
    %s96 = sor.u32 %s94, %s95
    %s97 = ssub.s32 %s20, %s29
    %s98 = sor.u32 %s96, %s97
    %p99 = scmp.eq.s32.totalorder %s98, 0
    %s101 = sadd.s32 %s100, 1
    %s102 = scalar_select %p99, %s100, %s101
    %p105 = pneg %p99
    %p106 = scmp.eq.s32.totalorder %s11, 7
    %p107 = por %p105, %p106
    %p108 = scmp.ne.s32.totalorder %s100, %s103
    %p109 = scmp.eq.s32.totalorder %s11, 0
    %p110 = por %p108, %p109
    %p111 = scmp.ne.s32.totalorder %s100, %s103
    %p112 = scmp.eq.s32.totalorder %s16, 7
    %p113 = por %p111, %p112
    %p114 = scmp.ne.s32.totalorder %s103, %s104
    %p115 = scmp.eq.s32.totalorder %s16, 0
    %p116 = por %p114, %p115
    %p117 = scmp.ne.s32.totalorder %s103, %s104
    %p118 = scmp.eq.s32.totalorder %s17, 7
    %p119 = por %p117, %p118
    %p121 = scmp.ne.s32.totalorder %s104, %s120
    %p122 = scmp.eq.s32.totalorder %s17, 0
    %p123 = por %p121, %p122
    %s124 = ssub.s32 %s18, %s37
    %s125 = ssub.s32 %s19, %s33
    %s126 = sor.u32 %s124, %s125
    %s127 = ssub.s32 %s20, %s29
    %s128 = sor.u32 %s126, %s127
    %p129 = scmp.eq.s32.totalorder %s128, 0
    %s131 = sadd.s32 %s130, 1
    %s132 = scalar_select %p129, %s130, %s131
    %p135 = pneg %p129
    %p136 = scmp.eq.s32.totalorder %s11, 7
    %p137 = por %p135, %p136
    %p138 = scmp.ne.s32.totalorder %s130, %s133
    %p139 = scmp.eq.s32.totalorder %s11, 0
    %p140 = por %p138, %p139
    %p141 = scmp.ne.s32.totalorder %s130, %s133
    %p142 = scmp.eq.s32.totalorder %s16, 7
    %p143 = por %p141, %p142
    %p144 = scmp.ne.s32.totalorder %s133, %s134
    %p145 = scmp.eq.s32.totalorder %s16, 0
    %p146 = por %p144, %p145
    %p147 = scmp.ne.s32.totalorder %s133, %s134
    %p148 = scmp.eq.s32.totalorder %s17, 7
    %p149 = por %p147, %p148
    %p151 = scmp.ne.s32.totalorder %s134, %s150
    %p152 = scmp.eq.s32.totalorder %s17, 0
    %p153 = por %p151, %p152
    %s154 = ssub.s32 %s18, %s37
    %s155 = ssub.s32 %s19, %s33
    %s156 = sor.u32 %s154, %s155
    %s157 = ssub.s32 %s20, %s29
    %s158 = sor.u32 %s156, %s157
    %p159 = scmp.eq.s32.totalorder %s158, 0
    %s161 = sadd.s32 %s160, 1
    %s162 = scalar_select %p159, %s160, %s161
    %p165 = pneg %p159
    %p166 = scmp.eq.s32.totalorder %s11, 7
    %p167 = por %p165, %p166
    %p168 = scmp.ne.s32.totalorder %s160, %s163
    %p169 = scmp.eq.s32.totalorder %s11, 0
    %p170 = por %p168, %p169
    %p171 = scmp.ne.s32.totalorder %s160, %s163
    %p172 = scmp.eq.s32.totalorder %s16, 7
    %p173 = por %p171, %p172
    %p174 = scmp.ne.s32.totalorder %s163, %s164
    %p175 = scmp.eq.s32.totalorder %s16, 0
    %p176 = por %p174, %p175
    %p177 = scmp.ne.s32.totalorder %s163, %s164
    %p178 = scmp.eq.s32.totalorder %s17, 7
    %p179 = por %p177, %p178
    %p181 = scmp.ne.s32.totalorder %s164, %s180
    %p182 = scmp.eq.s32.totalorder %s17, 0
    %p183 = por %p181, %p182
    %p184 = scmp.le.s32.totalorder 1, %s11
    %p185 = scmp.lt.s32.totalorder %s11, 9
    %p186 = pnand %p184, %p185
    %p187 = pneg %p186
    // Predicated region
    $region9: #{unet_up.2} parent=5 // pred_check
      _
    $region10: #{unet_up.2} parent=5 // pred_check_branch
      %189 = sbr.rel (%p186) target = $region12
    $region11: #{unet_up.2} parent=5 // pred_region
      %s190 = ssub.s32 %s11, 1
    $region12: #{unet_up.2} parent=5 // pred_fallthru
      _
    %p191 = scmp.lt.s32.totalorder %s11, 8
    // Predicated region
    $region13: #{unet_up.2} parent=5 // pred_check
      %p192 = pneg %p191
    $region14: #{unet_up.2} parent=5 // pred_check_branch
      %194 = sbr.rel (%p192) target = $region16
    $region15: #{unet_up.2} parent=5 // pred_region
      // Predicated region
      $region17: #{unet_up.2} parent=15 // pred_check
        %p195 = pneg %p54
      $region18: #{unet_up.2} parent=15 // pred_check_branch
        %197 = sbr.rel (%p195) target = $region20
      $region19: #{unet_up.2} parent=15 // pred_region
        %p198 = scmp.lt.s32.totalorder %s18, 1
        %s199 = scalar_select %p198, %s18, 1
        %p200 = scmp.lt.s32.totalorder %s19, 3
        %s201 = scalar_select %p200, %s19, 3
        %p202 = scmp.lt.s32.totalorder %s20, 0
        %s203 = scalar_select %p202, %s20, 0
        %s204 = smul.addr %s201, 4
        %s205 = sadd.s32 %s203, %s204
        %s206 = smul.addr %s199, 16
        %s207 = sadd.s32 %s205, %s206
        %s208 = smul.addr %s207, 4
        %s209 = scalar_lea.vmem %s0, %s208
      $region20: #{unet_up.2} parent=15 // pred_fallthru
        _
      // Predicated region
      $region21: #{unet_up.2} parent=15 // pred_check
        %p210 = pneg %p80
      $region22: #{unet_up.2} parent=15 // pred_check_branch
        %212 = sbr.rel (%p210) target = $region24
      $region23: #{unet_up.2} parent=15 // pred_region
        %p213 = scmp.lt.s32.totalorder %s19, 3
        %s214 = scalar_select %p213, %s19, 3
        %s215 = smul.addr %s214, 2
        %s216 = smul.addr %s215, 4
        %s217 = scalar_lea.vmem %s1, %s216
      $region24: #{unet_up.2} parent=15 // pred_fallthru
        _
    $region16: #{unet_up.2} parent=5 // pred_fallthru
      _
    %p218 = scmp.le.s32.totalorder 1, %s11
    %p219 = scmp.lt.s32.totalorder %s11, 9
    %p220 = pnand %p218, %p219
    %p221 = pneg %p220
    // Predicated region
    $region25: #{unet_up.2} parent=5 // pred_check
      _
    $region26: #{unet_up.2} parent=5 // pred_check_branch
      %223 = sbr.rel (%p220) target = $region28
    $region27: #{unet_up.2} parent=5 // pred_region
      %s224 = ssub.s32 %s11, 1
      %p225 = scmp.lt.s32.totalorder %s21, 1
      %s226 = scalar_select %p225, %s21, 1
      %p227 = scmp.lt.s32.totalorder %s22, 3
      %s228 = scalar_select %p227, %s22, 3
      %p229 = scmp.lt.s32.totalorder %s23, 0
      %s230 = scalar_select %p229, %s23, 0
      %s231 = smul.addr %s228, 4
      %s232 = sadd.s32 %s230, %s231
      %s233 = smul.addr %s226, 16
      %s234 = sadd.s32 %s232, %s233
      %s235 = smul.addr %s234, 4
      %s236 = scalar_lea.vmem %s0, %s235
      %p237 = pneg %p60
      %p238 = pneg %p57
      %p239 = scmp.lt.s32.totalorder %s22, 3
      %s240 = scalar_select %p239, %s22, 3
      %s241 = smul.addr %s240, 2
      %s242 = smul.addr %s241, 4
      %s243 = scalar_lea.vmem %s1, %s242
      %p244 = pneg %p86
      %p245 = pneg %p83
      %p246 = pneg %p116
      %p247 = pneg %p113
      %s248 = smul.u32 2, %s22
      %p249 = scmp.lt.s32.totalorder %s21, 1
      %s250 = scalar_select %p249, %s21, 1
      %p251 = scmp.lt.s32.totalorder %s248, 7
      %s252 = scalar_select %p251, %s248, 7
      %p253 = scmp.lt.s32.totalorder %s23, 0
      %s254 = scalar_select %p253, %s23, 0
      %s255 = sadd.s32 %s254, %s252
      %s256 = smul.addr %s250, 8
      %s257 = sadd.s32 %s255, %s256
      %s258 = smul.addr %s257, 4
      %s259 = scalar_lea.vmem %s2, %s258
      %p260 = pneg %p146
      %p261 = pneg %p143
      %p262 = scmp.lt.s32.totalorder %s21, 1
      %s263 = scalar_select %p262, %s21, 1
      %p264 = scmp.lt.s32.totalorder %s22, 3
      %s265 = scalar_select %p264, %s22, 3
      %p266 = scmp.lt.s32.totalorder %s23, 0
      %s267 = scalar_select %p266, %s23, 0
      %s268 = smul.addr %s267, 2
      %s269 = smul.addr %s265, 2
      %s270 = sadd.s32 %s268, %s269
      %s271 = smul.addr %s263, 8
      %s272 = sadd.s32 %s270, %s271
      %s273 = smul.addr %s272, 8
      %s274 = scalar_lea.vmem %s3, %s273
      %p275 = pneg %p176
      %p276 = pneg %p173
      %p277 = scmp.lt.s32.totalorder %s21, 1
      %s278 = scalar_select %p277, %s21, 1
      %p279 = scmp.lt.s32.totalorder %s22, 3
      %s280 = scalar_select %p279, %s22, 3
      %p281 = scmp.lt.s32.totalorder %s23, 0
      %s282 = scalar_select %p281, %s23, 0
      %s283 = smul.addr %s282, 2
      %s284 = smul.addr %s280, 2
      %s285 = sadd.s32 %s283, %s284
      %s286 = smul.addr %s278, 8
      %s287 = sadd.s32 %s285, %s286
      %s288 = smul.addr %s287, 8
      %s289 = scalar_lea.vmem %s4, %s288
      %p290 = scmp.lt.s32.totalorder %s21, 1
      %s291 = scalar_select %p290, %s21, 1
      %p292 = scmp.lt.s32.totalorder %s22, 3
      %s293 = scalar_select %p292, %s22, 3
      %p294 = scmp.lt.s32.totalorder %s23, 0
      %s295 = scalar_select %p294, %s23, 0
      %s296 = smul.addr %s293, 4
      %s297 = sadd.s32 %s295, %s296
      %s298 = smul.addr %s291, 16
      %s299 = sadd.s32 %s297, %s298
      %s300 = smul.addr %s299, 4
      %s301 = scalar_lea.vmem %s0, %s300
      %p302 = scmp.lt.s32.totalorder %s22, 3
      %s303 = scalar_select %p302, %s22, 3
      %s304 = smul.addr %s303, 2
      %s305 = smul.addr %s304, 4
      %s306 = scalar_lea.vmem %s1, %s305
      %s307 = smul.u32 2, %s22
      %p308 = scmp.lt.s32.totalorder %s21, 1
      %s309 = scalar_select %p308, %s21, 1
      %p310 = scmp.lt.s32.totalorder %s307, 7
      %s311 = scalar_select %p310, %s307, 7
      %p312 = scmp.lt.s32.totalorder %s23, 0
      %s313 = scalar_select %p312, %s23, 0
      %s314 = sadd.s32 %s313, %s311
      %s315 = smul.addr %s309, 8
      %s316 = sadd.s32 %s314, %s315
      %s317 = smul.addr %s316, 4
      %s318 = scalar_lea.vmem %s2, %s317
      %s319 = smul.u32 2, %s22
      %p320 = scmp.lt.s32.totalorder %s21, 1
      %s321 = scalar_select %p320, %s21, 1
      %p322 = scmp.lt.s32.totalorder %s22, 3
      %s323 = scalar_select %p322, %s22, 3
      %p324 = scmp.lt.s32.totalorder %s23, 0
      %s325 = scalar_select %p324, %s23, 0
      %s326 = smul.addr %s325, 2
      %s327 = smul.addr %s323, 2
      %s328 = sadd.s32 %s326, %s327
      %s329 = smul.addr %s321, 8
      %s330 = sadd.s32 %s328, %s329
      %s331 = smul.addr %s330, 8
      %s332 = scalar_lea.vmem %s3, %s331
      %p333 = scmp.lt.s32.totalorder %s21, 1
      %s334 = scalar_select %p333, %s21, 1
      %p335 = scmp.lt.s32.totalorder %s22, 3
      %s336 = scalar_select %p335, %s22, 3
      %p337 = scmp.lt.s32.totalorder %s23, 0
      %s338 = scalar_select %p337, %s23, 0
      %s339 = smul.addr %s338, 2
      %s340 = smul.addr %s336, 2
      %s341 = sadd.s32 %s339, %s340
      %s342 = smul.addr %s334, 8
      %s343 = sadd.s32 %s341, %s342
      %s344 = smul.addr %s343, 8
      %s345 = scalar_lea.vmem %s4, %s344
      %v347 = vld [vmem:[%s301] sm:$0xf]
      %v348 = vld [vmem:[%s301 + $0x4] sm:$0xf]
      %v349 = vld [vmem:[%s301 + $0x8] sm:$0xf]
      %v350 = vld [vmem:[%s301 + $0xc] sm:$0xf]
      %v351 = vld [vmem:[%s306] sm:$0xf]
      %v352 = vld [vmem:[%s306 + $0x4] sm:$0xf]
      %v355 = vunpack.c.l.b16 %v351
      %v356 = vunpack.c.l.b16 %v352
      %v357 = vpack.c.b16 %v356, %v355
      %v362 = vunpack.c.l.b16 %v347
      %v363 = vunpack.c.l.b16 %v348
      %v364 = vunpack.c.l.b16 %v349
      %v365 = vunpack.c.l.b16 %v350
      %v366 = vpack.c.b16 %v363, %v362
      %v367 = vpack.c.b16 %v365, %v364
      %vm370 = vcmask 261120
      %v372 = vsel %vm370, %v357, 0
      %374 = vmatprep.subr.bf16.mxu0 0
      %375 = vmatpush1.bf16.msra.mxu0 %v366
      %376 = vmatprep.subr.bf16.mxu0 0
      %377 = vmatpush1.bf16.msra.mxu0 %v367
      %378 = vmatprep.subr.bf16.mxu0 0
      %379 = vmatpush1.bf16.msra.mxu0 0
      %380 = vmatprep.subr.bf16.mxu0 0
      %381 = vmatpush1.bf16.msra.mxu0 0
      %382 = vmatprep.subr.bf16.mxu0 0
      %383 = vmatpush1.bf16.msra.mxu0 0
      %384 = vmatprep.subr.bf16.mxu0 0
      %385 = vmatpush1.bf16.msra.mxu0 0
      %386 = vmatprep.subr.bf16.mxu0 0
      %387 = vmatpush1.bf16.msra.mxu0 0
      %388 = vmatprep.subr.bf16.mxu0 0
      %389 = vmatpush1.bf16.msra.mxu0 0
      %390 = vmatprep.subr.bf16.mxu0 0
      %391 = vmatpush1.bf16.msra.mxu0 0
      %392 = vmatprep.subr.bf16.mxu0 0
      %393 = vmatpush1.bf16.msra.mxu0 0
      %394 = vmatprep.subr.bf16.mxu0 0
      %395 = vmatpush1.bf16.msra.mxu0 0
      %396 = vmatprep.subr.bf16.mxu0 0
      %397 = vmatpush1.bf16.msra.mxu0 0
      %398 = vmatprep.subr.bf16.mxu0 0
      %399 = vmatpush1.bf16.msra.mxu0 0
      %400 = vmatprep.subr.bf16.mxu0 0
      %401 = vmatpush1.bf16.msra.mxu0 0
      %402 = vmatprep.subr.bf16.mxu0 0
      %403 = vmatpush1.bf16.msra.mxu0 0
      %404 = vmatprep.subr.bf16.mxu0 0
      %405 = vmatpush1.bf16.msra.mxu0 0
      %406 = vmatprep.mubr.bf16.mxu0 0
      %407 = vmatmul.mubr.bf16.gmra.mrb[0].mxu0 %v372
      %v408 = vpop.f32.mrb[0].mxu0
      %v409 = vadd.f32 0.0, %v408
      %v410 = vpop.f32.mrb[0].mxu0
      %v411 = vpop.f32.mrb[0].mxu0
      %v412 = vadd.f32 0.0, %v411
      %v413 = vpop.f32.mrb[0].mxu0
      %414 = vdwg.mxu0
      %v415 = vpack.c.bf16 %v412, %v409
      %v417 = vunpack.c.l.b16 %v415
      %v418 = vunpack.c.h.b16 %v415
      %v419 = vpack.c.b16 %v417, %v417
      %v420 = vpack.c.b16 %v418, %v418
      %423 = vst [vmem:[%s318] sm:$0xf] %v419
      %424 = vst [vmem:[%s318 + $0x4] sm:$0xf] %v420
      %425 = vadd.xlane.f32.xlu0 %v409
      %v426 = vpop.xlane.xlu0 %425
      %427 = vadd.xlane.f32.xlu0 %v412
      %v428 = vpop.xlane.xlu0 %427
      %vm429 = vcmask 7168
      %430 = vst.msk [vmem:[%s332] sm:$0xff] %vm429, %v426
      %431 = vst.msk [vmem:[%s332 + $0x8] sm:$0xff] %vm429, %v428
      %v432 = vmul.f32 %v409, %v409
      %v433 = vmul.f32 %v412, %v412
      %434 = vadd.xlane.f32.xlu0 %v432
      %v435 = vpop.xlane.xlu0 %434
      %436 = vadd.xlane.f32.xlu0 %v433
      %v437 = vpop.xlane.xlu0 %436
      %438 = vst.msk [vmem:[%s345] sm:$0xff] %vm429, %v435
      %439 = vst.msk [vmem:[%s345 + $0x8] sm:$0xff] %vm429, %v437
      %s440 = smul.u32 2, %s22
      %p441 = scmp.lt.s32.totalorder %s21, 1
      %s442 = scalar_select %p441, %s21, 1
      %p443 = scmp.lt.s32.totalorder %s440, 7
      %s444 = scalar_select %p443, %s440, 7
      %p445 = scmp.lt.s32.totalorder %s23, 0
      %s446 = scalar_select %p445, %s23, 0
      %s447 = sadd.s32 %s446, %s444
      %s448 = smul.addr %s442, 8
      %s449 = sadd.s32 %s447, %s448
      %s450 = smul.addr %s449, 4
      %s451 = scalar_lea.vmem %s2, %s450
      %p452 = scmp.lt.s32.totalorder %s21, 1
      %s453 = scalar_select %p452, %s21, 1
      %p454 = scmp.lt.s32.totalorder %s22, 3
      %s455 = scalar_select %p454, %s22, 3
      %p456 = scmp.lt.s32.totalorder %s23, 0
      %s457 = scalar_select %p456, %s23, 0
      %s458 = smul.addr %s457, 2
      %s459 = smul.addr %s455, 2
      %s460 = sadd.s32 %s458, %s459
      %s461 = smul.addr %s453, 8
      %s462 = sadd.s32 %s460, %s461
      %s463 = smul.addr %s462, 8
      %s464 = scalar_lea.vmem %s3, %s463
      %p465 = scmp.lt.s32.totalorder %s21, 1
      %s466 = scalar_select %p465, %s21, 1
      %p467 = scmp.lt.s32.totalorder %s22, 3
      %s468 = scalar_select %p467, %s22, 3
      %p469 = scmp.lt.s32.totalorder %s23, 0
      %s470 = scalar_select %p469, %s23, 0
      %s471 = smul.addr %s470, 2
      %s472 = smul.addr %s468, 2
      %s473 = sadd.s32 %s471, %s472
      %s474 = smul.addr %s466, 8
      %s475 = sadd.s32 %s473, %s474
      %s476 = smul.addr %s475, 8
      %s477 = scalar_lea.vmem %s4, %s476
      // Predicated region
      $region29: #{unet_up.2} parent=27 // pred_check
        %p478 = pneg %p113
      $region30: #{unet_up.2} parent=27 // pred_check_branch
        %480 = sbr.rel (%p478) target = $region32
      $region31: #{unet_up.2} parent=27 // pred_region
        %s481 = smul.u32 2, %s22
      $region32: #{unet_up.2} parent=27 // pred_fallthru
        _
      // Predicated region
      $region33: #{unet_up.2} parent=27 // pred_check
        %p482 = pneg %p143
      $region34: #{unet_up.2} parent=27 // pred_check_branch
        %484 = sbr.rel (%p482) target = $region36
      $region35: #{unet_up.2} parent=27 // pred_region
        _
      $region36: #{unet_up.2} parent=27 // pred_fallthru
        _
      // Predicated region
      $region37: #{unet_up.2} parent=27 // pred_check
        %p485 = pneg %p173
      $region38: #{unet_up.2} parent=27 // pred_check_branch
        %487 = sbr.rel (%p485) target = $region40
      $region39: #{unet_up.2} parent=27 // pred_region
        _
      $region40: #{unet_up.2} parent=27 // pred_fallthru
        _
    $region28: #{unet_up.2} parent=5 // pred_fallthru
      _
    %p488 = scmp.le.s32.totalorder 2, %s11
    // Predicated region
    $region41: #{unet_up.2} parent=5 // pred_check
      %p489 = pneg %p488
    $region42: #{unet_up.2} parent=5 // pred_check_branch
      %491 = sbr.rel (%p489) target = $region44
    $region43: #{unet_up.2} parent=5 // pred_region
      %s492 = ssub.s32 %s11, 2
      // Predicated region
      $region45: #{unet_up.2} parent=43 // pred_check
        %p493 = pneg %p119
      $region46: #{unet_up.2} parent=43 // pred_check_branch
        %495 = sbr.rel (%p493) target = $region48
      $region47: #{unet_up.2} parent=43 // pred_region
        %s496 = smul.u32 2, %s25
        %p497 = scmp.lt.s32.totalorder %s24, 1
        %s498 = scalar_select %p497, %s24, 1
        %p499 = scmp.lt.s32.totalorder %s496, 7
        %s500 = scalar_select %p499, %s496, 7
        %p501 = scmp.lt.s32.totalorder %s26, 0
        %s502 = scalar_select %p501, %s26, 0
        %s503 = sadd.s32 %s502, %s500
        %s504 = smul.addr %s498, 8
        %s505 = sadd.s32 %s503, %s504
        %s506 = smul.addr %s505, 4
        %s507 = scalar_lea.vmem %s2, %s506
      $region48: #{unet_up.2} parent=43 // pred_fallthru
        _
      // Predicated region
      $region49: #{unet_up.2} parent=43 // pred_check
        %p508 = pneg %p149
      $region50: #{unet_up.2} parent=43 // pred_check_branch
        %510 = sbr.rel (%p508) target = $region52
      $region51: #{unet_up.2} parent=43 // pred_region
        %p511 = scmp.lt.s32.totalorder %s24, 1
        %s512 = scalar_select %p511, %s24, 1
        %p513 = scmp.lt.s32.totalorder %s25, 3
        %s514 = scalar_select %p513, %s25, 3
        %p515 = scmp.lt.s32.totalorder %s26, 0
        %s516 = scalar_select %p515, %s26, 0
        %s517 = smul.addr %s516, 2
        %s518 = smul.addr %s514, 2
        %s519 = sadd.s32 %s517, %s518
        %s520 = smul.addr %s512, 8
        %s521 = sadd.s32 %s519, %s520
        %s522 = smul.addr %s521, 8
        %s523 = scalar_lea.vmem %s3, %s522
      $region52: #{unet_up.2} parent=43 // pred_fallthru
        _
      // Predicated region
      $region53: #{unet_up.2} parent=43 // pred_check
        %p524 = pneg %p179
      $region54: #{unet_up.2} parent=43 // pred_check_branch
        %526 = sbr.rel (%p524) target = $region56
      $region55: #{unet_up.2} parent=43 // pred_region
        %p527 = scmp.lt.s32.totalorder %s24, 1
        %s528 = scalar_select %p527, %s24, 1
        %p529 = scmp.lt.s32.totalorder %s25, 3
        %s530 = scalar_select %p529, %s25, 3
        %p531 = scmp.lt.s32.totalorder %s26, 0
        %s532 = scalar_select %p531, %s26, 0
        %s533 = smul.addr %s532, 2
        %s534 = smul.addr %s530, 2
        %s535 = sadd.s32 %s533, %s534
        %s536 = smul.addr %s528, 8
        %s537 = sadd.s32 %s535, %s536
        %s538 = smul.addr %s537, 8
        %s539 = scalar_lea.vmem %s4, %s538
      $region56: #{unet_up.2} parent=43 // pred_fallthru
        _
    $region44: #{unet_up.2} parent=5 // pred_fallthru
      _
  $region6: #{unet_up.2} parent=0 // loop_footer
    %s15 = sadd.s32 1, %s11
  $region7: #{unet_up.2} parent=0 // loop_footer_branch
    %10 = sbr.rel target = $region3
  $region8: #{unet_up.2} parent=0 // loop_exit
    _

</llo_original>
